<compile_context>
chip_gen: v5e
topology: v5e:2x2
jax: 0.10.0
libtpu: 0.0.40
codegen_flags: <defaults>
</compile_context>

<pallas_src>
import functools
import math

import jax
import jax.numpy as jnp
from jax.experimental import pallas as pl
from jax.experimental.pallas import tpu as pltpu


# ----------------------------------------------------------------------------
# Fused multi-head-attention kernel: ONE grid step for the whole problem.
# ----------------------------------------------------------------------------
def _mha_fused_kernel(x_ref, wqkv_ref, bqkv_ref, wproj_ref, bproj_ref, o_ref,
                      heads_ref, *, batch, seq, num_heads):
    """x:(B*n,e) bf16  wqkv:(e,3e) bf16  bqkv:(1,3e) f32  wproj:(e,e)=Wp^T bf16
       bproj:(1,e) f32  o:(B*n,e) f32  heads_ref:(B*n,e) f32 VMEM scratch."""
    e = o_ref.shape[-1]
    d = e // num_heads

    # Batched QKV projection for the whole (B*n) slab: bf16 MXU, f32 accumulate.
    qkv = jnp.dot(x_ref[...], wqkv_ref[...], preferred_element_type=jnp.float32)
    qkv = qkv + bqkv_ref[...]            # f32; 1/sqrt(emb) already folded into Q cols/bias
    qkv_bf = qkv.astype(jnp.bfloat16)    # one cast; feeds the per-head MXU matmuls

    for b in range(batch):               # static unroll (B is tiny)
        r0 = b * seq
        for h in range(num_heads):       # static unroll (H is tiny)
            q = qkv_bf[r0:r0 + seq, h * d:(h + 1) * d]                    # (n, d)
            k = qkv_bf[r0:r0 + seq, e + h * d: e + (h + 1) * d]           # (n, d)
            v = qkv_bf[r0:r0 + seq, 2 * e + h * d: 2 * e + (h + 1) * d]   # (n, d)

            # s[i, j] = (q_i . k_j) / sqrt(e)   (scale pre-folded into q)
            s = jax.lax.dot_general(q, k, (((1,), (1,)), ((), ())),
                                    preferred_element_type=jnp.float32)
            # Row-max stabilization kept on purpose (cheap; avoids exp overflow for
            # unbounded inputs) -- only two cross-lane reductions per head (max, sum).
            s = s - jnp.max(s, axis=-1, keepdims=True)
            p = jnp.exp(s)
            p = p * pl.reciprocal(jnp.sum(p, axis=-1, keepdims=True), approx=True)

            o_h = jnp.dot(p.astype(jnp.bfloat16), v,
                          preferred_element_type=jnp.float32)             # (n, d)
            # Lane-offset masked store into the concat-of-heads scratch slab.
            heads_ref[pl.ds(r0, seq), pl.ds(h * d, d)] = o_h

    # Single output-projection matmul over the full (B*n, e) slab, then f32 bias;
    # one lane-dense store of the whole output.
    out = jnp.dot(heads_ref[...].astype(jnp.bfloat16), wproj_ref[...],
                  preferred_element_type=jnp.float32)
    o_ref[...] = (out + bproj_ref[...]).astype(o_ref.dtype)


# ----------------------------------------------------------------------------
# Host-side weight packing -- done ONCE when params are built (not per forward).
# ----------------------------------------------------------------------------
def pack_params(params, *, num_heads):
    e = params['q_w'].shape[0]
    assert e % num_heads == 0
    scale = 1.0 / math.sqrt(e)   # module uses emb_size ** 0.5 (not head_dim)
    # Torch Linear weights are (out, in); fold the 3 linears into one (e, 3e) matmul
    # and pre-scale the Q block so the kernel has no per-head scale multiply.
    wqkv = jnp.concatenate([params['q_w'] * scale, params['k_w'], params['v_w']],
                           axis=0).T                                   # (e, 3e)
    bqkv = jnp.concatenate([params['q_b'] * scale, params['k_b'], params['v_b']],
                           axis=0)[None, :]                            # (1, 3e)
    return dict(
        wqkv=wqkv.astype(jnp.bfloat16),                                # MXU-native bf16
        bqkv=bqkv.astype(jnp.float32),                                 # bias math in f32
        wproj=params['proj_w'].T.astype(jnp.bfloat16),                 # (e, e), in-features on rows
        bproj=params['proj_b'][None, :].astype(jnp.float32),           # (1, e)
    )


def multi_head_attention(x, packed, *, num_heads):
    """x: (B, n, emb) f32; packed: output of pack_params()."""
    B, n, e = x.shape
    BN = B * n
    x2 = x.reshape(BN, e).astype(jnp.bfloat16)   # free reshape; bf16 halves the input DMA

    kernel = functools.partial(_mha_fused_kernel, batch=B, seq=n, num_heads=num_heads)
    out = pl.pallas_call(
        kernel,
        out_shape=jax.ShapeDtypeStruct((BN, e), jnp.float32),
        grid=(1,),                                               # single fused step
        in_specs=[
            pl.BlockSpec((BN, e), lambda i: (0, 0)),             # all tokens, all batches
            pl.BlockSpec((e, 3 * e), lambda i: (0, 0)),          # fused QKV weight
            pl.BlockSpec((1, 3 * e), lambda i: (0, 0)),          # fused QKV bias
            pl.BlockSpec((e, e), lambda i: (0, 0)),              # Wproj^T
            pl.BlockSpec((1, e), lambda i: (0, 0)),              # bproj
        ],
        out_specs=pl.BlockSpec((BN, e), lambda i: (0, 0)),
        scratch_shapes=[pltpu.VMEM((BN, e), jnp.float32)],       # concat-of-heads slab
        compiler_params=pltpu.CompilerParams(
            dimension_semantics=("arbitrary",)),                 # no megacore split at this size
    )(x2, packed['wqkv'], packed['bqkv'], packed['wproj'], packed['bproj'])
    return out.reshape(B, n, e)


# ----------------------------------------------------------------------------
# Pure-JAX f32 reference (mirrors the PyTorch forward) + deterministic init
# ----------------------------------------------------------------------------
def mha_reference(x, params, *, num_heads):
    B, n, e = x.shape
    d = e // num_heads
    q = x @ params['q_w'].T + params['q_b']
    k = x @ params['k_w'].T + params['k_b']
    v = x @ params['v_w'].T + params['v_b']
    q = q.reshape(B, n, num_heads, d).transpose(0, 2, 1, 3)
    k = k.reshape(B, n, num_heads, d).transpose(0, 2, 1, 3)
    v = v.reshape(B, n, num_heads, d).transpose(0, 2, 1, 3)
    energy = jnp.einsum('bhqd,bhkd->bhqk', q, k)
    att = jax.nn.softmax(energy / math.sqrt(e), axis=-1)   # dropout = identity (eval)
    out = jnp.einsum('bhqk,bhkd->bhqd', att, v)
    out = out.transpose(0, 2, 1, 3).reshape(B, n, e)
    return out @ params['proj_w'].T + params['proj_b']


def _xavier_uniform(key, shape):
    fan_in, fan_out = shape[1], shape[0]
    bound = math.sqrt(6.0 / (fan_in + fan_out))
    return jax.random.uniform(key, shape, jnp.float32, -bound, bound)


def init_params(key, emb):
    k = jax.random.split(key, 8)
    return dict(
        q_w=_xavier_uniform(k[0], (emb, emb)), q_b=0.02 * jax.random.normal(k[1], (emb,), jnp.float32),
        k_w=_xavier_uniform(k[2], (emb, emb)), k_b=0.02 * jax.random.normal(k[3], (emb,), jnp.float32),
        v_w=_xavier_uniform(k[4], (emb, emb)), v_b=0.02 * jax.random.normal(k[5], (emb,), jnp.float32),
        proj_w=_xavier_uniform(k[6], (emb, emb)), proj_b=0.02 * jax.random.normal(k[7], (emb,), jnp.float32),
    )


# ----------------------------------------------------------------------------
if __name__ == "__main__":
    EMB, HEADS = 20, 5        # lmdaEmgCMC transformer config (head_dim = 4)
    B, N = 2, 16

    key = jax.random.PRNGKey(0)
    kp, kx = jax.random.split(key)
    params = init_params(kp, EMB)
    x = jax.random.normal(kx, (B, N, EMB), jnp.float32)

    packed = jax.tree_util.tree_map(jax.block_until_ready,
                                    pack_params(params, num_heads=HEADS))  # hoisted, runs once

    fwd = jax.jit(functools.partial(multi_head_attention, num_heads=HEADS))
    out = jax.block_until_ready(fwd(x, packed))

    assert out.shape == (B, N, EMB), out.shape
    assert jnp.all(jnp.isfinite(out))
    ref = mha_reference(x, params, num_heads=HEADS)
    max_err = float(jnp.max(jnp.abs(out - ref)))
    # Tolerance covers bf16 MXU inputs (f32 accumulate) + approx-reciprocal softmax.
    assert max_err < 3e-2, max_err
    print("KERNEL_OK")
</pallas_src>

<mosaic_0001>
module attributes {stable_mosaic.version = 11 : i64} {
  func.func @_mha_fused_kernel(%arg0: i32, %arg1: memref<32x20xbf16, #tpu.memory_space<vmem>>, %arg2: memref<20x60xbf16, #tpu.memory_space<vmem>>, %arg3: memref<1x60xf32, #tpu.memory_space<vmem>>, %arg4: memref<20x20xbf16, #tpu.memory_space<vmem>>, %arg5: memref<1x20xf32, #tpu.memory_space<vmem>>, %arg6: memref<32x20xf32, #tpu.memory_space<vmem>>, %arg7: memref<32x20xf32, #tpu.memory_space<vmem>>) attributes {dimension_semantics = [#tpu.dimension_semantics<arbitrary>], iteration_bounds = array<i64: 1>, scalar_prefetch = 0 : i64, scratch_operands = 1 : i64, tpu.core_type = #tpu.core_type<tc>, window_params = [{pipeline_mode = #tpu.pipeline_mode<synchronous>, transform_indices = @transform_0, window_bounds = array<i64: 32, 20>}, {pipeline_mode = #tpu.pipeline_mode<synchronous>, transform_indices = @transform_1, window_bounds = array<i64: 20, 60>}, {pipeline_mode = #tpu.pipeline_mode<synchronous>, transform_indices = @transform_2, window_bounds = array<i64: 1, 60>}, {pipeline_mode = #tpu.pipeline_mode<synchronous>, transform_indices = @transform_3, window_bounds = array<i64: 20, 20>}, {pipeline_mode = #tpu.pipeline_mode<synchronous>, transform_indices = @transform_4, window_bounds = array<i64: 1, 20>}, {pipeline_mode = #tpu.pipeline_mode<synchronous>, transform_indices = @transform_5, window_bounds = array<i64: 32, 20>}]} {
    %c0 = arith.constant 0 : index
    %c0_0 = arith.constant 0 : index
    %0 = vector.load %arg1[%c0, %c0_0] : memref<32x20xbf16, #tpu.memory_space<vmem>>, vector<32x20xbf16>
    %c0_1 = arith.constant 0 : index
    %c0_2 = arith.constant 0 : index
    %1 = vector.load %arg2[%c0_1, %c0_2] : memref<20x60xbf16, #tpu.memory_space<vmem>>, vector<20x60xbf16>
    %cst = arith.constant dense<0.000000e+00> : vector<32x60xf32>
    %2 = tpu.matmul %0, %1, %cst {dimension_numbers = #tpu.dot_dimension_numbers<[1], [0], [0], [1], [0, 0, 1, 1], [], []>} : vector<32x20xbf16>, vector<20x60xbf16>, vector<32x60xf32> -> vector<32x60xf32>
    %c0_3 = arith.constant 0 : index
    %c0_4 = arith.constant 0 : index
    %3 = vector.load %arg3[%c0_3, %c0_4] : memref<1x60xf32, #tpu.memory_space<vmem>>, vector<1x60xf32>
    %4 = vector.broadcast %3 : vector<1x60xf32> to vector<32x60xf32>
    %5 = arith.addf %2, %4 : vector<32x60xf32>
    %6 = arith.truncf %5 : vector<32x60xf32> to vector<32x60xbf16>
    %7 = vector.extract_strided_slice %6 {offsets = [0, 0], sizes = [16, 4], strides = [1, 1]} : vector<32x60xbf16> to vector<16x4xbf16>
    %8 = vector.extract_strided_slice %6 {offsets = [0, 20], sizes = [16, 4], strides = [1, 1]} : vector<32x60xbf16> to vector<16x4xbf16>
    %9 = vector.extract_strided_slice %6 {offsets = [0, 40], sizes = [16, 4], strides = [1, 1]} : vector<32x60xbf16> to vector<16x4xbf16>
    %cst_5 = arith.constant dense<0.000000e+00> : vector<16x16xf32>
    %10 = tpu.matmul %7, %8, %cst_5 {dimension_numbers = #tpu.dot_dimension_numbers<[1], [1], [0], [0], [0, 0, 1, 0], [], []>} : vector<16x4xbf16>, vector<16x4xbf16>, vector<16x16xf32> -> vector<16x16xf32>
    %cst_6 = arith.constant dense<0xFF800000> : vector<16xf32>
    %11 = vector.multi_reduction <maximumf>, %10, %cst_6 [1] : vector<16x16xf32> to vector<16xf32>
    %12 = vector.shape_cast %11 : vector<16xf32> to vector<16x1xf32>
    %13 = vector.broadcast %12 : vector<16x1xf32> to vector<16x16xf32>
    %14 = arith.subf %10, %13 : vector<16x16xf32>
    %15 = math.exp %14 : vector<16x16xf32>
    %cst_7 = arith.constant dense<0.000000e+00> : vector<16xf32>
    %16 = vector.multi_reduction <add>, %15, %cst_7 [1] : vector<16x16xf32> to vector<16xf32>
    %17 = vector.shape_cast %16 : vector<16xf32> to vector<16x1xf32>
    %18 = tpu.reciprocal %17 {approx = true} : vector<16x1xf32> -> vector<16x1xf32>
    %19 = vector.broadcast %18 : vector<16x1xf32> to vector<16x16xf32>
    %20 = arith.mulf %15, %19 : vector<16x16xf32>
    %21 = arith.truncf %20 : vector<16x16xf32> to vector<16x16xbf16>
    %cst_8 = arith.constant dense<0.000000e+00> : vector<16x4xf32>
    %22 = tpu.matmul %21, %9, %cst_8 {dimension_numbers = #tpu.dot_dimension_numbers<[1], [0], [0], [1], [0, 0, 1, 1], [], []>} : vector<16x16xbf16>, vector<16x4xbf16>, vector<16x4xf32> -> vector<16x4xf32>
    %c0_9 = arith.constant 0 : index
    %c0_10 = arith.constant 0 : index
    %23 = vector.load %arg7[%c0_9, %c0_10] : memref<32x20xf32, #tpu.memory_space<vmem>>, vector<16x4xf32>
    tpu.vector_store %arg7[%c0_9, %c0_10], %22 {strides = array<i32>} : memref<32x20xf32, #tpu.memory_space<vmem>>, vector<16x4xf32>,
    %24 = vector.extract_strided_slice %6 {offsets = [0, 4], sizes = [16, 4], strides = [1, 1]} : vector<32x60xbf16> to vector<16x4xbf16>
    %25 = vector.extract_strided_slice %6 {offsets = [0, 24], sizes = [16, 4], strides = [1, 1]} : vector<32x60xbf16> to vector<16x4xbf16>
    %26 = vector.extract_strided_slice %6 {offsets = [0, 44], sizes = [16, 4], strides = [1, 1]} : vector<32x60xbf16> to vector<16x4xbf16>
    %cst_11 = arith.constant dense<0.000000e+00> : vector<16x16xf32>
    %27 = tpu.matmul %24, %25, %cst_11 {dimension_numbers = #tpu.dot_dimension_numbers<[1], [1], [0], [0], [0, 0, 1, 0], [], []>} : vector<16x4xbf16>, vector<16x4xbf16>, vector<16x16xf32> -> vector<16x16xf32>
    %cst_12 = arith.constant dense<0xFF800000> : vector<16xf32>
    %28 = vector.multi_reduction <maximumf>, %27, %cst_12 [1] : vector<16x16xf32> to vector<16xf32>
    %29 = vector.shape_cast %28 : vector<16xf32> to vector<16x1xf32>
    %30 = vector.broadcast %29 : vector<16x1xf32> to vector<16x16xf32>
    %31 = arith.subf %27, %30 : vector<16x16xf32>
    %32 = math.exp %31 : vector<16x16xf32>
    %cst_13 = arith.constant dense<0.000000e+00> : vector<16xf32>
    %33 = vector.multi_reduction <add>, %32, %cst_13 [1] : vector<16x16xf32> to vector<16xf32>
    %34 = vector.shape_cast %33 : vector<16xf32> to vector<16x1xf32>
    %35 = tpu.reciprocal %34 {approx = true} : vector<16x1xf32> -> vector<16x1xf32>
    %36 = vector.broadcast %35 : vector<16x1xf32> to vector<16x16xf32>
    %37 = arith.mulf %32, %36 : vector<16x16xf32>
    %38 = arith.truncf %37 : vector<16x16xf32> to vector<16x16xbf16>
    %cst_14 = arith.constant dense<0.000000e+00> : vector<16x4xf32>
    %39 = tpu.matmul %38, %26, %cst_14 {dimension_numbers = #tpu.dot_dimension_numbers<[1], [0], [0], [1], [0, 0, 1, 1], [], []>} : vector<16x16xbf16>, vector<16x4xbf16>, vector<16x4xf32> -> vector<16x4xf32>
    %c0_15 = arith.constant 0 : index
    %c4 = arith.constant 4 : index
    %40 = vector.load %arg7[%c0_15, %c4] : memref<32x20xf32, #tpu.memory_space<vmem>>, vector<16x4xf32>
    tpu.vector_store %arg7[%c0_15, %c4], %39 {strides = array<i32>} : memref<32x20xf32, #tpu.memory_space<vmem>>, vector<16x4xf32>,
    %41 = vector.extract_strided_slice %6 {offsets = [0, 8], sizes = [16, 4], strides = [1, 1]} : vector<32x60xbf16> to vector<16x4xbf16>
    %42 = vector.extract_strided_slice %6 {offsets = [0, 28], sizes = [16, 4], strides = [1, 1]} : vector<32x60xbf16> to vector<16x4xbf16>
    %43 = vector.extract_strided_slice %6 {offsets = [0, 48], sizes = [16, 4], strides = [1, 1]} : vector<32x60xbf16> to vector<16x4xbf16>
    %cst_16 = arith.constant dense<0.000000e+00> : vector<16x16xf32>
    %44 = tpu.matmul %41, %42, %cst_16 {dimension_numbers = #tpu.dot_dimension_numbers<[1], [1], [0], [0], [0, 0, 1, 0], [], []>} : vector<16x4xbf16>, vector<16x4xbf16>, vector<16x16xf32> -> vector<16x16xf32>
    %cst_17 = arith.constant dense<0xFF800000> : vector<16xf32>
    %45 = vector.multi_reduction <maximumf>, %44, %cst_17 [1] : vector<16x16xf32> to vector<16xf32>
    %46 = vector.shape_cast %45 : vector<16xf32> to vector<16x1xf32>
    %47 = vector.broadcast %46 : vector<16x1xf32> to vector<16x16xf32>
    %48 = arith.subf %44, %47 : vector<16x16xf32>
    %49 = math.exp %48 : vector<16x16xf32>
    %cst_18 = arith.constant dense<0.000000e+00> : vector<16xf32>
    %50 = vector.multi_reduction <add>, %49, %cst_18 [1] : vector<16x16xf32> to vector<16xf32>
    %51 = vector.shape_cast %50 : vector<16xf32> to vector<16x1xf32>
    %52 = tpu.reciprocal %51 {approx = true} : vector<16x1xf32> -> vector<16x1xf32>
    %53 = vector.broadcast %52 : vector<16x1xf32> to vector<16x16xf32>
    %54 = arith.mulf %49, %53 : vector<16x16xf32>
    %55 = arith.truncf %54 : vector<16x16xf32> to vector<16x16xbf16>
    %cst_19 = arith.constant dense<0.000000e+00> : vector<16x4xf32>
    %56 = tpu.matmul %55, %43, %cst_19 {dimension_numbers = #tpu.dot_dimension_numbers<[1], [0], [0], [1], [0, 0, 1, 1], [], []>} : vector<16x16xbf16>, vector<16x4xbf16>, vector<16x4xf32> -> vector<16x4xf32>
    %c0_20 = arith.constant 0 : index
    %c8 = arith.constant 8 : index
    %57 = vector.load %arg7[%c0_20, %c8] : memref<32x20xf32, #tpu.memory_space<vmem>>, vector<16x4xf32>
    tpu.vector_store %arg7[%c0_20, %c8], %56 {strides = array<i32>} : memref<32x20xf32, #tpu.memory_space<vmem>>, vector<16x4xf32>,
    %58 = vector.extract_strided_slice %6 {offsets = [0, 12], sizes = [16, 4], strides = [1, 1]} : vector<32x60xbf16> to vector<16x4xbf16>
    %59 = vector.extract_strided_slice %6 {offsets = [0, 32], sizes = [16, 4], strides = [1, 1]} : vector<32x60xbf16> to vector<16x4xbf16>
    %60 = vector.extract_strided_slice %6 {offsets = [0, 52], sizes = [16, 4], strides = [1, 1]} : vector<32x60xbf16> to vector<16x4xbf16>
    %cst_21 = arith.constant dense<0.000000e+00> : vector<16x16xf32>
    %61 = tpu.matmul %58, %59, %cst_21 {dimension_numbers = #tpu.dot_dimension_numbers<[1], [1], [0], [0], [0, 0, 1, 0], [], []>} : vector<16x4xbf16>, vector<16x4xbf16>, vector<16x16xf32> -> vector<16x16xf32>
    %cst_22 = arith.constant dense<0xFF800000> : vector<16xf32>
    %62 = vector.multi_reduction <maximumf>, %61, %cst_22 [1] : vector<16x16xf32> to vector<16xf32>
    %63 = vector.shape_cast %62 : vector<16xf32> to vector<16x1xf32>
    %64 = vector.broadcast %63 : vector<16x1xf32> to vector<16x16xf32>
    %65 = arith.subf %61, %64 : vector<16x16xf32>
    %66 = math.exp %65 : vector<16x16xf32>
    %cst_23 = arith.constant dense<0.000000e+00> : vector<16xf32>
    %67 = vector.multi_reduction <add>, %66, %cst_23 [1] : vector<16x16xf32> to vector<16xf32>
    %68 = vector.shape_cast %67 : vector<16xf32> to vector<16x1xf32>
    %69 = tpu.reciprocal %68 {approx = true} : vector<16x1xf32> -> vector<16x1xf32>
    %70 = vector.broadcast %69 : vector<16x1xf32> to vector<16x16xf32>
    %71 = arith.mulf %66, %70 : vector<16x16xf32>
    %72 = arith.truncf %71 : vector<16x16xf32> to vector<16x16xbf16>
    %cst_24 = arith.constant dense<0.000000e+00> : vector<16x4xf32>
    %73 = tpu.matmul %72, %60, %cst_24 {dimension_numbers = #tpu.dot_dimension_numbers<[1], [0], [0], [1], [0, 0, 1, 1], [], []>} : vector<16x16xbf16>, vector<16x4xbf16>, vector<16x4xf32> -> vector<16x4xf32>
    %c0_25 = arith.constant 0 : index
    %c12 = arith.constant 12 : index
    %74 = vector.load %arg7[%c0_25, %c12] : memref<32x20xf32, #tpu.memory_space<vmem>>, vector<16x4xf32>
    tpu.vector_store %arg7[%c0_25, %c12], %73 {strides = array<i32>} : memref<32x20xf32, #tpu.memory_space<vmem>>, vector<16x4xf32>,
    %75 = vector.extract_strided_slice %6 {offsets = [0, 16], sizes = [16, 4], strides = [1, 1]} : vector<32x60xbf16> to vector<16x4xbf16>
    %76 = vector.extract_strided_slice %6 {offsets = [0, 36], sizes = [16, 4], strides = [1, 1]} : vector<32x60xbf16> to vector<16x4xbf16>
    %77 = vector.extract_strided_slice %6 {offsets = [0, 56], sizes = [16, 4], strides = [1, 1]} : vector<32x60xbf16> to vector<16x4xbf16>
    %cst_26 = arith.constant dense<0.000000e+00> : vector<16x16xf32>
    %78 = tpu.matmul %75, %76, %cst_26 {dimension_numbers = #tpu.dot_dimension_numbers<[1], [1], [0], [0], [0, 0, 1, 0], [], []>} : vector<16x4xbf16>, vector<16x4xbf16>, vector<16x16xf32> -> vector<16x16xf32>
    %cst_27 = arith.constant dense<0xFF800000> : vector<16xf32>
    %79 = vector.multi_reduction <maximumf>, %78, %cst_27 [1] : vector<16x16xf32> to vector<16xf32>
    %80 = vector.shape_cast %79 : vector<16xf32> to vector<16x1xf32>
    %81 = vector.broadcast %80 : vector<16x1xf32> to vector<16x16xf32>
    %82 = arith.subf %78, %81 : vector<16x16xf32>
    %83 = math.exp %82 : vector<16x16xf32>
    %cst_28 = arith.constant dense<0.000000e+00> : vector<16xf32>
    %84 = vector.multi_reduction <add>, %83, %cst_28 [1] : vector<16x16xf32> to vector<16xf32>
    %85 = vector.shape_cast %84 : vector<16xf32> to vector<16x1xf32>
    %86 = tpu.reciprocal %85 {approx = true} : vector<16x1xf32> -> vector<16x1xf32>
    %87 = vector.broadcast %86 : vector<16x1xf32> to vector<16x16xf32>
    %88 = arith.mulf %83, %87 : vector<16x16xf32>
    %89 = arith.truncf %88 : vector<16x16xf32> to vector<16x16xbf16>
    %cst_29 = arith.constant dense<0.000000e+00> : vector<16x4xf32>
    %90 = tpu.matmul %89, %77, %cst_29 {dimension_numbers = #tpu.dot_dimension_numbers<[1], [0], [0], [1], [0, 0, 1, 1], [], []>} : vector<16x16xbf16>, vector<16x4xbf16>, vector<16x4xf32> -> vector<16x4xf32>
    %c0_30 = arith.constant 0 : index
    %c16 = arith.constant 16 : index
    %91 = vector.load %arg7[%c0_30, %c16] : memref<32x20xf32, #tpu.memory_space<vmem>>, vector<16x4xf32>
    tpu.vector_store %arg7[%c0_30, %c16], %90 {strides = array<i32>} : memref<32x20xf32, #tpu.memory_space<vmem>>, vector<16x4xf32>,
    %92 = vector.extract_strided_slice %6 {offsets = [16, 0], sizes = [16, 4], strides = [1, 1]} : vector<32x60xbf16> to vector<16x4xbf16>
    %93 = vector.extract_strided_slice %6 {offsets = [16, 20], sizes = [16, 4], strides = [1, 1]} : vector<32x60xbf16> to vector<16x4xbf16>
    %94 = vector.extract_strided_slice %6 {offsets = [16, 40], sizes = [16, 4], strides = [1, 1]} : vector<32x60xbf16> to vector<16x4xbf16>
    %cst_31 = arith.constant dense<0.000000e+00> : vector<16x16xf32>
    %95 = tpu.matmul %92, %93, %cst_31 {dimension_numbers = #tpu.dot_dimension_numbers<[1], [1], [0], [0], [0, 0, 1, 0], [], []>} : vector<16x4xbf16>, vector<16x4xbf16>, vector<16x16xf32> -> vector<16x16xf32>
    %cst_32 = arith.constant dense<0xFF800000> : vector<16xf32>
    %96 = vector.multi_reduction <maximumf>, %95, %cst_32 [1] : vector<16x16xf32> to vector<16xf32>
    %97 = vector.shape_cast %96 : vector<16xf32> to vector<16x1xf32>
    %98 = vector.broadcast %97 : vector<16x1xf32> to vector<16x16xf32>
    %99 = arith.subf %95, %98 : vector<16x16xf32>
    %100 = math.exp %99 : vector<16x16xf32>
    %cst_33 = arith.constant dense<0.000000e+00> : vector<16xf32>
    %101 = vector.multi_reduction <add>, %100, %cst_33 [1] : vector<16x16xf32> to vector<16xf32>
    %102 = vector.shape_cast %101 : vector<16xf32> to vector<16x1xf32>
    %103 = tpu.reciprocal %102 {approx = true} : vector<16x1xf32> -> vector<16x1xf32>
    %104 = vector.broadcast %103 : vector<16x1xf32> to vector<16x16xf32>
    %105 = arith.mulf %100, %104 : vector<16x16xf32>
    %106 = arith.truncf %105 : vector<16x16xf32> to vector<16x16xbf16>
    %cst_34 = arith.constant dense<0.000000e+00> : vector<16x4xf32>
    %107 = tpu.matmul %106, %94, %cst_34 {dimension_numbers = #tpu.dot_dimension_numbers<[1], [0], [0], [1], [0, 0, 1, 1], [], []>} : vector<16x16xbf16>, vector<16x4xbf16>, vector<16x4xf32> -> vector<16x4xf32>
    %c16_35 = arith.constant 16 : index
    %c0_36 = arith.constant 0 : index
    %108 = vector.load %arg7[%c16_35, %c0_36] : memref<32x20xf32, #tpu.memory_space<vmem>>, vector<16x4xf32>
    tpu.vector_store %arg7[%c16_35, %c0_36], %107 {strides = array<i32>} : memref<32x20xf32, #tpu.memory_space<vmem>>, vector<16x4xf32>,
    %109 = vector.extract_strided_slice %6 {offsets = [16, 4], sizes = [16, 4], strides = [1, 1]} : vector<32x60xbf16> to vector<16x4xbf16>
    %110 = vector.extract_strided_slice %6 {offsets = [16, 24], sizes = [16, 4], strides = [1, 1]} : vector<32x60xbf16> to vector<16x4xbf16>
    %111 = vector.extract_strided_slice %6 {offsets = [16, 44], sizes = [16, 4], strides = [1, 1]} : vector<32x60xbf16> to vector<16x4xbf16>
    %cst_37 = arith.constant dense<0.000000e+00> : vector<16x16xf32>
    %112 = tpu.matmul %109, %110, %cst_37 {dimension_numbers = #tpu.dot_dimension_numbers<[1], [1], [0], [0], [0, 0, 1, 0], [], []>} : vector<16x4xbf16>, vector<16x4xbf16>, vector<16x16xf32> -> vector<16x16xf32>
    %cst_38 = arith.constant dense<0xFF800000> : vector<16xf32>
    %113 = vector.multi_reduction <maximumf>, %112, %cst_38 [1] : vector<16x16xf32> to vector<16xf32>
    %114 = vector.shape_cast %113 : vector<16xf32> to vector<16x1xf32>
    %115 = vector.broadcast %114 : vector<16x1xf32> to vector<16x16xf32>
    %116 = arith.subf %112, %115 : vector<16x16xf32>
    %117 = math.exp %116 : vector<16x16xf32>
    %cst_39 = arith.constant dense<0.000000e+00> : vector<16xf32>
    %118 = vector.multi_reduction <add>, %117, %cst_39 [1] : vector<16x16xf32> to vector<16xf32>
    %119 = vector.shape_cast %118 : vector<16xf32> to vector<16x1xf32>
    %120 = tpu.reciprocal %119 {approx = true} : vector<16x1xf32> -> vector<16x1xf32>
    %121 = vector.broadcast %120 : vector<16x1xf32> to vector<16x16xf32>
    %122 = arith.mulf %117, %121 : vector<16x16xf32>
    %123 = arith.truncf %122 : vector<16x16xf32> to vector<16x16xbf16>
    %cst_40 = arith.constant dense<0.000000e+00> : vector<16x4xf32>
    %124 = tpu.matmul %123, %111, %cst_40 {dimension_numbers = #tpu.dot_dimension_numbers<[1], [0], [0], [1], [0, 0, 1, 1], [], []>} : vector<16x16xbf16>, vector<16x4xbf16>, vector<16x4xf32> -> vector<16x4xf32>
    %c16_41 = arith.constant 16 : index
    %c4_42 = arith.constant 4 : index
    %125 = vector.load %arg7[%c16_41, %c4_42] : memref<32x20xf32, #tpu.memory_space<vmem>>, vector<16x4xf32>
    tpu.vector_store %arg7[%c16_41, %c4_42], %124 {strides = array<i32>} : memref<32x20xf32, #tpu.memory_space<vmem>>, vector<16x4xf32>,
    %126 = vector.extract_strided_slice %6 {offsets = [16, 8], sizes = [16, 4], strides = [1, 1]} : vector<32x60xbf16> to vector<16x4xbf16>
    %127 = vector.extract_strided_slice %6 {offsets = [16, 28], sizes = [16, 4], strides = [1, 1]} : vector<32x60xbf16> to vector<16x4xbf16>
    %128 = vector.extract_strided_slice %6 {offsets = [16, 48], sizes = [16, 4], strides = [1, 1]} : vector<32x60xbf16> to vector<16x4xbf16>
    %cst_43 = arith.constant dense<0.000000e+00> : vector<16x16xf32>
    %129 = tpu.matmul %126, %127, %cst_43 {dimension_numbers = #tpu.dot_dimension_numbers<[1], [1], [0], [0], [0, 0, 1, 0], [], []>} : vector<16x4xbf16>, vector<16x4xbf16>, vector<16x16xf32> -> vector<16x16xf32>
    %cst_44 = arith.constant dense<0xFF800000> : vector<16xf32>
    %130 = vector.multi_reduction <maximumf>, %129, %cst_44 [1] : vector<16x16xf32> to vector<16xf32>
    %131 = vector.shape_cast %130 : vector<16xf32> to vector<16x1xf32>
    %132 = vector.broadcast %131 : vector<16x1xf32> to vector<16x16xf32>
    %133 = arith.subf %129, %132 : vector<16x16xf32>
    %134 = math.exp %133 : vector<16x16xf32>
    %cst_45 = arith.constant dense<0.000000e+00> : vector<16xf32>
    %135 = vector.multi_reduction <add>, %134, %cst_45 [1] : vector<16x16xf32> to vector<16xf32>
    %136 = vector.shape_cast %135 : vector<16xf32> to vector<16x1xf32>
    %137 = tpu.reciprocal %136 {approx = true} : vector<16x1xf32> -> vector<16x1xf32>
    %138 = vector.broadcast %137 : vector<16x1xf32> to vector<16x16xf32>
    %139 = arith.mulf %134, %138 : vector<16x16xf32>
    %140 = arith.truncf %139 : vector<16x16xf32> to vector<16x16xbf16>
    %cst_46 = arith.constant dense<0.000000e+00> : vector<16x4xf32>
    %141 = tpu.matmul %140, %128, %cst_46 {dimension_numbers = #tpu.dot_dimension_numbers<[1], [0], [0], [1], [0, 0, 1, 1], [], []>} : vector<16x16xbf16>, vector<16x4xbf16>, vector<16x4xf32> -> vector<16x4xf32>
    %c16_47 = arith.constant 16 : index
    %c8_48 = arith.constant 8 : index
    %142 = vector.load %arg7[%c16_47, %c8_48] : memref<32x20xf32, #tpu.memory_space<vmem>>, vector<16x4xf32>
    tpu.vector_store %arg7[%c16_47, %c8_48], %141 {strides = array<i32>} : memref<32x20xf32, #tpu.memory_space<vmem>>, vector<16x4xf32>,
    %143 = vector.extract_strided_slice %6 {offsets = [16, 12], sizes = [16, 4], strides = [1, 1]} : vector<32x60xbf16> to vector<16x4xbf16>
    %144 = vector.extract_strided_slice %6 {offsets = [16, 32], sizes = [16, 4], strides = [1, 1]} : vector<32x60xbf16> to vector<16x4xbf16>
    %145 = vector.extract_strided_slice %6 {offsets = [16, 52], sizes = [16, 4], strides = [1, 1]} : vector<32x60xbf16> to vector<16x4xbf16>
    %cst_49 = arith.constant dense<0.000000e+00> : vector<16x16xf32>
    %146 = tpu.matmul %143, %144, %cst_49 {dimension_numbers = #tpu.dot_dimension_numbers<[1], [1], [0], [0], [0, 0, 1, 0], [], []>} : vector<16x4xbf16>, vector<16x4xbf16>, vector<16x16xf32> -> vector<16x16xf32>
    %cst_50 = arith.constant dense<0xFF800000> : vector<16xf32>
    %147 = vector.multi_reduction <maximumf>, %146, %cst_50 [1] : vector<16x16xf32> to vector<16xf32>
    %148 = vector.shape_cast %147 : vector<16xf32> to vector<16x1xf32>
    %149 = vector.broadcast %148 : vector<16x1xf32> to vector<16x16xf32>
    %150 = arith.subf %146, %149 : vector<16x16xf32>
    %151 = math.exp %150 : vector<16x16xf32>
    %cst_51 = arith.constant dense<0.000000e+00> : vector<16xf32>
    %152 = vector.multi_reduction <add>, %151, %cst_51 [1] : vector<16x16xf32> to vector<16xf32>
    %153 = vector.shape_cast %152 : vector<16xf32> to vector<16x1xf32>
    %154 = tpu.reciprocal %153 {approx = true} : vector<16x1xf32> -> vector<16x1xf32>
    %155 = vector.broadcast %154 : vector<16x1xf32> to vector<16x16xf32>
    %156 = arith.mulf %151, %155 : vector<16x16xf32>
    %157 = arith.truncf %156 : vector<16x16xf32> to vector<16x16xbf16>
    %cst_52 = arith.constant dense<0.000000e+00> : vector<16x4xf32>
    %158 = tpu.matmul %157, %145, %cst_52 {dimension_numbers = #tpu.dot_dimension_numbers<[1], [0], [0], [1], [0, 0, 1, 1], [], []>} : vector<16x16xbf16>, vector<16x4xbf16>, vector<16x4xf32> -> vector<16x4xf32>
    %c16_53 = arith.constant 16 : index
    %c12_54 = arith.constant 12 : index
    %159 = vector.load %arg7[%c16_53, %c12_54] : memref<32x20xf32, #tpu.memory_space<vmem>>, vector<16x4xf32>
    tpu.vector_store %arg7[%c16_53, %c12_54], %158 {strides = array<i32>} : memref<32x20xf32, #tpu.memory_space<vmem>>, vector<16x4xf32>,
    %160 = vector.extract_strided_slice %6 {offsets = [16, 16], sizes = [16, 4], strides = [1, 1]} : vector<32x60xbf16> to vector<16x4xbf16>
    %161 = vector.extract_strided_slice %6 {offsets = [16, 36], sizes = [16, 4], strides = [1, 1]} : vector<32x60xbf16> to vector<16x4xbf16>
    %162 = vector.extract_strided_slice %6 {offsets = [16, 56], sizes = [16, 4], strides = [1, 1]} : vector<32x60xbf16> to vector<16x4xbf16>
    %cst_55 = arith.constant dense<0.000000e+00> : vector<16x16xf32>
    %163 = tpu.matmul %160, %161, %cst_55 {dimension_numbers = #tpu.dot_dimension_numbers<[1], [1], [0], [0], [0, 0, 1, 0], [], []>} : vector<16x4xbf16>, vector<16x4xbf16>, vector<16x16xf32> -> vector<16x16xf32>
    %cst_56 = arith.constant dense<0xFF800000> : vector<16xf32>
    %164 = vector.multi_reduction <maximumf>, %163, %cst_56 [1] : vector<16x16xf32> to vector<16xf32>
    %165 = vector.shape_cast %164 : vector<16xf32> to vector<16x1xf32>
    %166 = vector.broadcast %165 : vector<16x1xf32> to vector<16x16xf32>
    %167 = arith.subf %163, %166 : vector<16x16xf32>
    %168 = math.exp %167 : vector<16x16xf32>
    %cst_57 = arith.constant dense<0.000000e+00> : vector<16xf32>
    %169 = vector.multi_reduction <add>, %168, %cst_57 [1] : vector<16x16xf32> to vector<16xf32>
    %170 = vector.shape_cast %169 : vector<16xf32> to vector<16x1xf32>
    %171 = tpu.reciprocal %170 {approx = true} : vector<16x1xf32> -> vector<16x1xf32>
    %172 = vector.broadcast %171 : vector<16x1xf32> to vector<16x16xf32>
    %173 = arith.mulf %168, %172 : vector<16x16xf32>
    %174 = arith.truncf %173 : vector<16x16xf32> to vector<16x16xbf16>
    %cst_58 = arith.constant dense<0.000000e+00> : vector<16x4xf32>
    %175 = tpu.matmul %174, %162, %cst_58 {dimension_numbers = #tpu.dot_dimension_numbers<[1], [0], [0], [1], [0, 0, 1, 1], [], []>} : vector<16x16xbf16>, vector<16x4xbf16>, vector<16x4xf32> -> vector<16x4xf32>
    %c16_59 = arith.constant 16 : index
    %c16_60 = arith.constant 16 : index
    %176 = vector.load %arg7[%c16_59, %c16_60] : memref<32x20xf32, #tpu.memory_space<vmem>>, vector<16x4xf32>
    tpu.vector_store %arg7[%c16_59, %c16_60], %175 {strides = array<i32>} : memref<32x20xf32, #tpu.memory_space<vmem>>, vector<16x4xf32>,
    %c0_61 = arith.constant 0 : index
    %c0_62 = arith.constant 0 : index
    %177 = vector.load %arg7[%c0_61, %c0_62] : memref<32x20xf32, #tpu.memory_space<vmem>>, vector<32x20xf32>
    %178 = arith.truncf %177 : vector<32x20xf32> to vector<32x20xbf16>
    %c0_63 = arith.constant 0 : index
    %c0_64 = arith.constant 0 : index
    %179 = vector.load %arg4[%c0_63, %c0_64] : memref<20x20xbf16, #tpu.memory_space<vmem>>, vector<20x20xbf16>
    %cst_65 = arith.constant dense<0.000000e+00> : vector<32x20xf32>
    %180 = tpu.matmul %178, %179, %cst_65 {dimension_numbers = #tpu.dot_dimension_numbers<[1], [0], [0], [1], [0, 0, 1, 1], [], []>} : vector<32x20xbf16>, vector<20x20xbf16>, vector<32x20xf32> -> vector<32x20xf32>
    %c0_66 = arith.constant 0 : index
    %c0_67 = arith.constant 0 : index
    %181 = vector.load %arg5[%c0_66, %c0_67] : memref<1x20xf32, #tpu.memory_space<vmem>>, vector<1x20xf32>
    %182 = vector.broadcast %181 : vector<1x20xf32> to vector<32x20xf32>
    %183 = arith.addf %180, %182 : vector<32x20xf32>
    %c0_68 = arith.constant 0 : index
    %c0_69 = arith.constant 0 : index
    %184 = vector.load %arg6[%c0_68, %c0_69] : memref<32x20xf32, #tpu.memory_space<vmem>>, vector<32x20xf32>
    tpu.vector_store %arg6[%c0_68, %c0_69], %183 {strides = array<i32>} : memref<32x20xf32, #tpu.memory_space<vmem>>, vector<32x20xf32>,
    return
  }
  func.func @transform_0(%arg0: i32) -> (i32, i32) {
    %c0_i32 = arith.constant 0 : i32
    %c0_i32_0 = arith.constant 0 : i32
    %c0_i32_1 = arith.constant 0 : i32
    return %c0_i32, %c0_i32_0 : i32, i32
  }
  func.func @transform_1(%arg0: i32) -> (i32, i32) {
    %c0_i32 = arith.constant 0 : i32
    %c0_i32_0 = arith.constant 0 : i32
    %c0_i32_1 = arith.constant 0 : i32
    return %c0_i32, %c0_i32_0 : i32, i32
  }
  func.func @transform_2(%arg0: i32) -> (i32, i32) {
    %c0_i32 = arith.constant 0 : i32
    %c0_i32_0 = arith.constant 0 : i32
    %c0_i32_1 = arith.constant 0 : i32
    return %c0_i32, %c0_i32_0 : i32, i32
  }
  func.func @transform_3(%arg0: i32) -> (i32, i32) {
    %c0_i32 = arith.constant 0 : i32
    %c0_i32_0 = arith.constant 0 : i32
    %c0_i32_1 = arith.constant 0 : i32
    return %c0_i32, %c0_i32_0 : i32, i32
  }
  func.func @transform_4(%arg0: i32) -> (i32, i32) {
    %c0_i32 = arith.constant 0 : i32
    %c0_i32_0 = arith.constant 0 : i32
    %c0_i32_1 = arith.constant 0 : i32
    return %c0_i32, %c0_i32_0 : i32, i32
  }
  func.func @transform_5(%arg0: i32) -> (i32, i32) {
    %c0_i32 = arith.constant 0 : i32
    %c0_i32_0 = arith.constant 0 : i32
    %c0_i32_1 = arith.constant 0 : i32
    return %c0_i32, %c0_i32_0 : i32, i32
  }
}

</mosaic_0001>

<llo_original>
// kernel: multi_head_attention.1
$region0: #{multi_head_attention.1}
  #allocation0 [shape = 'u32[]', space=smem, size = 0x4, offset = 0x4, fixed_abs, tag = 'smem constant byte address 0x4 - core index']
  #allocation1 [shape = 'u32[72,128]{1,0:T(1,128)}', space=vmem, size = 0x9000, scoped, tag = 'internal scratch']
  #allocation2 [shape = 'f32[32,20]{1,0:T(8,128)}', space=vmem, size = 0x4000, scoped, tag = 'scratch operand']
  %s0 = inlined_call_operand.vmem [shape: bf16[32,20], index: 0, kind: input, shape index: {}]
  %s1 = inlined_call_operand.vmem [shape: bf16[20,60], index: 1, kind: input, shape index: {}]
  %s2 = inlined_call_operand.vmem [shape: f32[1,60], index: 2, kind: input, shape index: {}]
  %s3 = inlined_call_operand.vmem [shape: bf16[20,20], index: 3, kind: input, shape index: {}]
  %s4 = inlined_call_operand.vmem [shape: f32[1,20], index: 4, kind: input, shape index: {}]
  %s5 = inlined_call_operand.hbm [shape: f32[32,20], index: 5, kind: output, shape index: {}]
  %s6 = sld [smem:[#allocation0]]
  $region30: #{multi_head_attention.1} parent=0
    _
  %s8 = ssub.s32 1, %s6
  %s9 = scalar_select 0, %s8, %s6
  $region1: #{multi_head_attention.1} parent=0
    #allocation3 [shape = 'u8[16384]{0}', space=vmem, size = 0x4000, scoped, tag = 'output window, operand 0, single buffered']
    #allocation4 [shape = 's32[1]{0}', space=sflag, size = 0x4, scoped, tag = 'scoped memory for multi_head_attention.1']
    %10 = vsyncpa [#allocation4], 0
    // Predicated region
    $region2: #{multi_head_attention.1} parent=1 // pred_check
      _
    $region3: #{multi_head_attention.1} parent=1 // pred_check_branch
      %12 = sbr.rel (0) target = $region5
    $region4: #{multi_head_attention.1} parent=1 // pred_region
      _
    $region5: #{multi_head_attention.1} parent=1 // pred_fallthru
      _
    // Predicated region
    $region6: #{multi_head_attention.1} parent=1 // pred_check
      _
    $region7: #{multi_head_attention.1} parent=1 // pred_check_branch
      %14 = sbr.rel (0) target = $region9
    $region8: #{multi_head_attention.1} parent=1 // pred_region
      _
    $region9: #{multi_head_attention.1} parent=1 // pred_fallthru
      _
    // Predicated region
    $region10: #{multi_head_attention.1} parent=1 // pred_check
      _
    $region11: #{multi_head_attention.1} parent=1 // pred_check_branch
      %16 = sbr.rel (0) target = $region13
    $region12: #{multi_head_attention.1} parent=1 // pred_region
      _
    $region13: #{multi_head_attention.1} parent=1 // pred_fallthru
      _
    // Predicated region
    $region14: #{multi_head_attention.1} parent=1 // pred_check
      _
    $region15: #{multi_head_attention.1} parent=1 // pred_check_branch
      %18 = sbr.rel (0) target = $region17
    $region16: #{multi_head_attention.1} parent=1 // pred_region
      _
    $region17: #{multi_head_attention.1} parent=1 // pred_fallthru
      _
    // Predicated region
    $region18: #{multi_head_attention.1} parent=1 // pred_check
      _
    $region19: #{multi_head_attention.1} parent=1 // pred_check_branch
      %20 = sbr.rel (0) target = $region21
    $region20: #{multi_head_attention.1} parent=1 // pred_region
      _
    $region21: #{multi_head_attention.1} parent=1 // pred_fallthru
      _
    %v22 = vld [vmem:[%s0] sm:$0xf]
    %v23 = vld [vmem:[%s0 + $0x4] sm:$0xf]
    %v24 = vld [vmem:[%s0 + $0x8] sm:$0xf]
    %v25 = vld [vmem:[%s0 + $0xc] sm:$0xf]
    %v26 = vld [vmem:[%s1] sm:$0xf]
    %v27 = vld [vmem:[%s1 + $0x4] sm:$0xf]
    %v28 = vld [vmem:[%s1 + $0x8] sm:$0x3]
    %v29 = vld [vmem:[%s2] sm:$0x1]
    %v31 = vperm.slane %v29, 0
    %v37 = vunpack.c.l.b16 %v22
    %v38 = vunpack.c.l.b16 %v23
    %v39 = vunpack.c.l.b16 %v24
    %v40 = vunpack.c.l.b16 %v25
    %v41 = vpack.c.b16 %v38, %v37
    %v42 = vpack.c.b16 %v40, %v39
    %v46 = vunpack.c.l.b16 %v26
    %v47 = vunpack.c.l.b16 %v27
    %v48 = vunpack.c.l.b16 %v28
    %v49 = vpack.c.b16 %v47, %v46
    %v50 = vpack.c.b16 %v48, %v48
    %vm52 = vcmask 162816
    %v54 = vsel %vm52, %v41, 0
    %v57 = vsel %vm52, %v42, 0
    %vm59 = vcmask 1041408
    %v61 = vsel %vm59, %v50, 0
    %63 = vmatpush.bf16.msra.mxu0 0
    %64 = vmatpush.bf16.msra.mxu0 0
    %65 = vmatpush.bf16.msra.mxu0 0
    %66 = vmatpush.bf16.msra.mxu0 0
    %67 = vmatpush.bf16.msra.mxu0 0
    %68 = vmatpush.bf16.msra.mxu0 0
    %69 = vmatpush.bf16.msra.mxu0 %v61
    %70 = vmatpush.bf16.msra.mxu0 %v49
    %71 = vmatmul.bf16.gmra.mxu0 %v54
    %v72 = vpop.f32.mrf.mxu0
    %v73 = vadd.f32 %v31, %v72
    %v74 = vpop.f32.mrf.mxu0
    %v75 = vadd.f32 %v31, %v74
    %76 = vmatmul.bf16.gmra.mxu0 %v57
    %v77 = vpop.f32.mrf.mxu0
    %v78 = vadd.f32 %v31, %v77
    %v79 = vpop.f32.mrf.mxu0
    %v80 = vadd.f32 %v31, %v79
    %81 = vdwg.mxu0
    %v82 = vpack.c.bf16 %v73, %v73
    %v83 = vpack.c.bf16 %v75, %v75
    %v84 = vpack.c.bf16 %v78, %v78
    %v85 = vpack.c.bf16 %v80, %v80
    %v88 = vunpack.c.l.b16 %v82
    %v89 = vunpack.c.l.b16 %v83
    %v90 = vpack.c.b16 %v89, %v88
    %91 = vrot.lane.b32.xlu0 %v90, 108
    %v92 = vpop.permute.xlu0 %91
    %vm93 = vcmask 31744
    %v95 = vsel %vm93, %v90, 0
    %v98 = vsel %vm93, %v92, 0
    %100 = vmatpush.bf16.xpose.msra.mxu0 0
    %101 = vmatpush.bf16.xpose.msra.mxu0 0
    %102 = vmatpush.bf16.xpose.msra.mxu0 0
    %103 = vmatpush.bf16.xpose.msra.mxu0 0
    %104 = vmatpush.bf16.xpose.msra.mxu0 0
    %105 = vmatpush.bf16.xpose.msra.mxu0 0
    %106 = vmatpush.bf16.xpose.msra.mxu0 0
    %107 = vmatpush.bf16.xpose.msra.mxu0 %v98
    %108 = vmatmul.bf16.gmra.mxu0 %v95
    %v109 = vpop.f32.mrf.mxu0
    %v110 = vadd.f32 0.0, %v109
    %v111 = vpop.f32.mrf.mxu0
    %v112 = vadd.f32 0.0, %v111
    %113 = vdwg.mxu0
    %vm114 = vcmask 130048
    %v115 = vsel %vm114, %v110, -inf
    %116 = vmax.xlane.f32.xlu0 %v115
    %v117 = vpop.xlane.xlu0 %116
    %v118 = vsel %vm114, %v112, -inf
    %119 = vmax.xlane.f32.xlu0 %v118
    %v120 = vpop.xlane.xlu0 %119
    %v121 = vsub.f32 %v110, %v117
    %v122 = vsub.f32 %v112, %v120
    %v123 = vmul.f32 %v121, 1.442695
    %v124 = vpow.pop %v123
    %v125 = vmul.f32 %v122, 1.442695
    %v126 = vpow.pop %v125
    %v127 = vsel %vm114, %v124, 0.0
    %128 = vadd.xlane.f32.xlu0 %v127
    %v129 = vpop.xlane.xlu0 %128
    %v130 = vsel %vm114, %v126, 0.0
    %131 = vadd.xlane.f32.xlu0 %v130
    %v132 = vpop.xlane.xlu0 %131
    %v133 = vrcp.pop %v129
    %v134 = vrcp.pop %v132
    %v135 = vmul.f32 %v124, %v133
    %v136 = vmul.f32 %v126, %v134
    %v137 = vpack.c.bf16 %v136, %v135
    %138 = vrot.lane.b32.xlu0 %v90, 88
    %v139 = vpop.permute.xlu0 %138
    %v142 = vsel %vm114, %v137, 0
    %144 = vmatpush.bf16.msra.mxu0 0
    %145 = vmatpush.bf16.msra.mxu0 0
    %146 = vmatpush.bf16.msra.mxu0 0
    %147 = vmatpush.bf16.msra.mxu0 0
    %148 = vmatpush.bf16.msra.mxu0 0
    %149 = vmatpush.bf16.msra.mxu0 0
    %150 = vmatpush.bf16.msra.mxu0 0
    %151 = vmatpush.bf16.msra.mxu0 %v139
    %152 = vmatmul.bf16.gmra.mxu0 %v142
    %v153 = vpop.f32.mrf.mxu0
    %v154 = vadd.f32 0.0, %v153
    %v155 = vpop.f32.mrf.mxu0
    %v156 = vadd.f32 0.0, %v155
    %157 = vdwg.mxu0
    %158 = vst.msk [vmem:[#allocation2] sm:$0xff] %vm93, %v154
    %159 = vst.msk [vmem:[#allocation2 + $0x8] sm:$0xff] %vm93, %v156
    %160 = vrot.lane.b32.xlu0 %v90, 124
    %v161 = vpop.permute.xlu0 %160
    %162 = vrot.lane.b32.xlu0 %v90, 104
    %v163 = vpop.permute.xlu0 %162
    %v165 = vsel %vm93, %v161, 0
    %v168 = vsel %vm93, %v163, 0
    %170 = vmatpush.bf16.xpose.msra.mxu0 0
    %171 = vmatpush.bf16.xpose.msra.mxu0 0
    %172 = vmatpush.bf16.xpose.msra.mxu0 0
    %173 = vmatpush.bf16.xpose.msra.mxu0 0
    %174 = vmatpush.bf16.xpose.msra.mxu0 0
    %175 = vmatpush.bf16.xpose.msra.mxu0 0
    %176 = vmatpush.bf16.xpose.msra.mxu0 0
    %177 = vmatpush.bf16.xpose.msra.mxu0 %v168
    %178 = vmatmul.bf16.gmra.mxu0 %v165
    %v179 = vpop.f32.mrf.mxu0
    %v180 = vadd.f32 0.0, %v179
    %v181 = vpop.f32.mrf.mxu0
    %v182 = vadd.f32 0.0, %v181
    %183 = vdwg.mxu0
    %v184 = vsel %vm114, %v180, -inf
    %185 = vmax.xlane.f32.xlu0 %v184
    %v186 = vpop.xlane.xlu0 %185
    %v187 = vsel %vm114, %v182, -inf
    %188 = vmax.xlane.f32.xlu0 %v187
    %v189 = vpop.xlane.xlu0 %188
    %v190 = vsub.f32 %v180, %v186
    %v191 = vsub.f32 %v182, %v189
    %v192 = vmul.f32 %v190, 1.442695
    %v193 = vpow.pop %v192
    %v194 = vmul.f32 %v191, 1.442695
    %v195 = vpow.pop %v194
    %v196 = vsel %vm114, %v193, 0.0
    %197 = vadd.xlane.f32.xlu0 %v196
    %v198 = vpop.xlane.xlu0 %197
    %v199 = vsel %vm114, %v195, 0.0
    %200 = vadd.xlane.f32.xlu0 %v199
    %v201 = vpop.xlane.xlu0 %200
    %v202 = vrcp.pop %v198
    %v203 = vrcp.pop %v201
    %v204 = vmul.f32 %v193, %v202
    %v205 = vmul.f32 %v195, %v203
    %v206 = vpack.c.bf16 %v205, %v204
    %207 = vrot.lane.b32.xlu0 %v90, 84
    %v208 = vpop.permute.xlu0 %207
    %v211 = vsel %vm114, %v206, 0
    %213 = vmatpush.bf16.msra.mxu0 0
    %214 = vmatpush.bf16.msra.mxu0 0
    %215 = vmatpush.bf16.msra.mxu0 0
    %216 = vmatpush.bf16.msra.mxu0 0
    %217 = vmatpush.bf16.msra.mxu0 0
    %218 = vmatpush.bf16.msra.mxu0 0
    %219 = vmatpush.bf16.msra.mxu0 0
    %220 = vmatpush.bf16.msra.mxu0 %v208
    %221 = vmatmul.bf16.gmra.mxu0 %v211
    %v222 = vpop.f32.mrf.mxu0
    %v223 = vadd.f32 0.0, %v222
    %v224 = vpop.f32.mrf.mxu0
    %v225 = vadd.f32 0.0, %v224
    %226 = vdwg.mxu0
    %229 = vrot.lane.b32.xlu0 %v223, 4
    %v230 = vpop.permute.xlu0 %229
    %231 = vrot.lane.b32.xlu0 %v225, 4
    %v232 = vpop.permute.xlu0 %231
    %vm235 = vcmask 64544
    %236 = vst.msk [vmem:[#allocation2] sm:$0xff] %vm235, %v230
    %237 = vst.msk [vmem:[#allocation2 + $0x8] sm:$0xff] %vm235, %v232
    %238 = vrot.lane.b32.xlu0 %v90, 120
    %v239 = vpop.permute.xlu0 %238
    %240 = vrot.lane.b32.xlu0 %v90, 100
    %v241 = vpop.permute.xlu0 %240
    %v243 = vsel %vm93, %v239, 0
    %v246 = vsel %vm93, %v241, 0
    %248 = vmatpush.bf16.xpose.msra.mxu0 0
    %249 = vmatpush.bf16.xpose.msra.mxu0 0
    %250 = vmatpush.bf16.xpose.msra.mxu0 0
    %251 = vmatpush.bf16.xpose.msra.mxu0 0
    %252 = vmatpush.bf16.xpose.msra.mxu0 0
    %253 = vmatpush.bf16.xpose.msra.mxu0 0
    %254 = vmatpush.bf16.xpose.msra.mxu0 0
    %255 = vmatpush.bf16.xpose.msra.mxu0 %v246
    %256 = vmatmul.bf16.gmra.mxu0 %v243
    %v257 = vpop.f32.mrf.mxu0
    %v258 = vadd.f32 0.0, %v257
    %v259 = vpop.f32.mrf.mxu0
    %v260 = vadd.f32 0.0, %v259
    %261 = vdwg.mxu0
    %v262 = vsel %vm114, %v258, -inf
    %263 = vmax.xlane.f32.xlu0 %v262
    %v264 = vpop.xlane.xlu0 %263
    %v265 = vsel %vm114, %v260, -inf
    %266 = vmax.xlane.f32.xlu0 %v265
    %v267 = vpop.xlane.xlu0 %266
    %v268 = vsub.f32 %v258, %v264
    %v269 = vsub.f32 %v260, %v267
    %v270 = vmul.f32 %v268, 1.442695
    %v271 = vpow.pop %v270
    %v272 = vmul.f32 %v269, 1.442695
    %v273 = vpow.pop %v272
    %v274 = vsel %vm114, %v271, 0.0
    %275 = vadd.xlane.f32.xlu0 %v274
    %v276 = vpop.xlane.xlu0 %275
    %v277 = vsel %vm114, %v273, 0.0
    %278 = vadd.xlane.f32.xlu0 %v277
    %v279 = vpop.xlane.xlu0 %278
    %v280 = vrcp.pop %v276
    %v281 = vrcp.pop %v279
    %v282 = vmul.f32 %v271, %v280
    %v283 = vmul.f32 %v273, %v281
    %v284 = vpack.c.bf16 %v283, %v282
    %285 = vrot.lane.b32.xlu0 %v90, 80
    %v286 = vpop.permute.xlu0 %285
    %v289 = vsel %vm114, %v284, 0
    %291 = vmatpush.bf16.msra.mxu0 0
    %292 = vmatpush.bf16.msra.mxu0 0
    %293 = vmatpush.bf16.msra.mxu0 0
    %294 = vmatpush.bf16.msra.mxu0 0
    %295 = vmatpush.bf16.msra.mxu0 0
    %296 = vmatpush.bf16.msra.mxu0 0
    %297 = vmatpush.bf16.msra.mxu0 0
    %298 = vmatpush.bf16.msra.mxu0 %v286
    %299 = vmatmul.bf16.gmra.mxu0 %v289
    %v300 = vpop.f32.mrf.mxu0
    %v301 = vadd.f32 0.0, %v300
    %v302 = vpop.f32.mrf.mxu0
    %v303 = vadd.f32 0.0, %v302
    %304 = vdwg.mxu0
    %307 = vrot.lane.b32.xlu0 %v301, 8
    %v308 = vpop.permute.xlu0 %307
    %309 = vrot.lane.b32.xlu0 %v303, 8
    %v310 = vpop.permute.xlu0 %309
    %vm313 = vcmask 97344
    %314 = vst.msk [vmem:[#allocation2] sm:$0xff] %vm313, %v308
    %315 = vst.msk [vmem:[#allocation2 + $0x8] sm:$0xff] %vm313, %v310
    %316 = vrot.lane.b32.xlu0 %v90, 116
    %v317 = vpop.permute.xlu0 %316
    %318 = vrot.lane.b32.xlu0 %v90, 96
    %v319 = vpop.permute.xlu0 %318
    %v321 = vsel %vm93, %v317, 0
    %v324 = vsel %vm93, %v319, 0
    %326 = vmatpush.bf16.xpose.msra.mxu0 0
    %327 = vmatpush.bf16.xpose.msra.mxu0 0
    %328 = vmatpush.bf16.xpose.msra.mxu0 0
    %329 = vmatpush.bf16.xpose.msra.mxu0 0
    %330 = vmatpush.bf16.xpose.msra.mxu0 0
    %331 = vmatpush.bf16.xpose.msra.mxu0 0
    %332 = vmatpush.bf16.xpose.msra.mxu0 0
    %333 = vmatpush.bf16.xpose.msra.mxu0 %v324
    %334 = vmatmul.bf16.gmra.mxu0 %v321
    %v335 = vpop.f32.mrf.mxu0
    %v336 = vadd.f32 0.0, %v335
    %v337 = vpop.f32.mrf.mxu0
    %v338 = vadd.f32 0.0, %v337
    %339 = vdwg.mxu0
    %v340 = vsel %vm114, %v336, -inf
    %341 = vmax.xlane.f32.xlu0 %v340
    %v342 = vpop.xlane.xlu0 %341
    %v343 = vsel %vm114, %v338, -inf
    %344 = vmax.xlane.f32.xlu0 %v343
    %v345 = vpop.xlane.xlu0 %344
    %v346 = vsub.f32 %v336, %v342
    %v347 = vsub.f32 %v338, %v345
    %v348 = vmul.f32 %v346, 1.442695
    %v349 = vpow.pop %v348
    %v350 = vmul.f32 %v347, 1.442695
    %v351 = vpow.pop %v350
    %v352 = vsel %vm114, %v349, 0.0
    %353 = vadd.xlane.f32.xlu0 %v352
    %v354 = vpop.xlane.xlu0 %353
    %v355 = vsel %vm114, %v351, 0.0
    %356 = vadd.xlane.f32.xlu0 %v355
    %v357 = vpop.xlane.xlu0 %356
    %v358 = vrcp.pop %v354
    %v359 = vrcp.pop %v357
    %v360 = vmul.f32 %v349, %v358
    %v361 = vmul.f32 %v351, %v359
    %v362 = vpack.c.bf16 %v361, %v360
    %363 = vrot.lane.b32.xlu0 %v90, 76
    %v364 = vpop.permute.xlu0 %363
    %v367 = vsel %vm114, %v362, 0
    %369 = vmatpush.bf16.msra.mxu0 0
    %370 = vmatpush.bf16.msra.mxu0 0
    %371 = vmatpush.bf16.msra.mxu0 0
    %372 = vmatpush.bf16.msra.mxu0 0
    %373 = vmatpush.bf16.msra.mxu0 0
    %374 = vmatpush.bf16.msra.mxu0 0
    %375 = vmatpush.bf16.msra.mxu0 0
    %376 = vmatpush.bf16.msra.mxu0 %v364
    %377 = vmatmul.bf16.gmra.mxu0 %v367
    %v378 = vpop.f32.mrf.mxu0
    %v379 = vadd.f32 0.0, %v378
    %v380 = vpop.f32.mrf.mxu0
    %v381 = vadd.f32 0.0, %v380
    %382 = vdwg.mxu0
    %385 = vrot.lane.b32.xlu0 %v379, 12
    %v386 = vpop.permute.xlu0 %385
    %387 = vrot.lane.b32.xlu0 %v381, 12
    %v388 = vpop.permute.xlu0 %387
    %vm391 = vcmask 130144
    %392 = vst.msk [vmem:[#allocation2] sm:$0xff] %vm391, %v386
    %393 = vst.msk [vmem:[#allocation2 + $0x8] sm:$0xff] %vm391, %v388
    %394 = vrot.lane.b32.xlu0 %v90, 112
    %v395 = vpop.permute.xlu0 %394
    %396 = vrot.lane.b32.xlu0 %v90, 92
    %v397 = vpop.permute.xlu0 %396
    %v399 = vsel %vm93, %v395, 0
    %v402 = vsel %vm93, %v397, 0
    %404 = vmatpush.bf16.xpose.msra.mxu0 0
    %405 = vmatpush.bf16.xpose.msra.mxu0 0
    %406 = vmatpush.bf16.xpose.msra.mxu0 0
    %407 = vmatpush.bf16.xpose.msra.mxu0 0
    %408 = vmatpush.bf16.xpose.msra.mxu0 0
    %409 = vmatpush.bf16.xpose.msra.mxu0 0
    %410 = vmatpush.bf16.xpose.msra.mxu0 0
    %411 = vmatpush.bf16.xpose.msra.mxu0 %v402
    %412 = vmatmul.bf16.gmra.mxu0 %v399
    %v413 = vpop.f32.mrf.mxu0
    %v414 = vadd.f32 0.0, %v413
    %v415 = vpop.f32.mrf.mxu0
    %v416 = vadd.f32 0.0, %v415
    %417 = vdwg.mxu0
    %v418 = vsel %vm114, %v414, -inf
    %419 = vmax.xlane.f32.xlu0 %v418
    %v420 = vpop.xlane.xlu0 %419
    %v421 = vsel %vm114, %v416, -inf
    %422 = vmax.xlane.f32.xlu0 %v421
    %v423 = vpop.xlane.xlu0 %422
    %v424 = vsub.f32 %v414, %v420
    %v425 = vsub.f32 %v416, %v423
    %v426 = vmul.f32 %v424, 1.442695
    %v427 = vpow.pop %v426
    %v428 = vmul.f32 %v425, 1.442695
    %v429 = vpow.pop %v428
    %v430 = vsel %vm114, %v427, 0.0
    %431 = vadd.xlane.f32.xlu0 %v430
    %v432 = vpop.xlane.xlu0 %431
    %v433 = vsel %vm114, %v429, 0.0
    %434 = vadd.xlane.f32.xlu0 %v433
    %v435 = vpop.xlane.xlu0 %434
    %v436 = vrcp.pop %v432
    %v437 = vrcp.pop %v435
    %v438 = vmul.f32 %v427, %v436
    %v439 = vmul.f32 %v429, %v437
    %v440 = vpack.c.bf16 %v439, %v438
    %441 = vrot.lane.b32.xlu0 %v90, 72
    %v442 = vpop.permute.xlu0 %441
    %v445 = vsel %vm114, %v440, 0
    %447 = vmatpush.bf16.msra.mxu0 0
    %448 = vmatpush.bf16.msra.mxu0 0
    %449 = vmatpush.bf16.msra.mxu0 0
    %450 = vmatpush.bf16.msra.mxu0 0
    %451 = vmatpush.bf16.msra.mxu0 0
    %452 = vmatpush.bf16.msra.mxu0 0
    %453 = vmatpush.bf16.msra.mxu0 0
    %454 = vmatpush.bf16.msra.mxu0 %v442
    %455 = vmatmul.bf16.gmra.mxu0 %v445
    %v456 = vpop.f32.mrf.mxu0
    %v457 = vadd.f32 0.0, %v456
    %v458 = vpop.f32.mrf.mxu0
    %v459 = vadd.f32 0.0, %v458
    %460 = vdwg.mxu0
    %463 = vrot.lane.b32.xlu0 %v457, 16
    %v464 = vpop.permute.xlu0 %463
    %465 = vrot.lane.b32.xlu0 %v459, 16
    %v466 = vpop.permute.xlu0 %465
    %vm469 = vcmask 162944
    %470 = vst.msk [vmem:[#allocation2] sm:$0xff] %vm469, %v464
    %471 = vst.msk [vmem:[#allocation2 + $0x8] sm:$0xff] %vm469, %v466
    %v474 = vunpack.c.l.b16 %v84
    %v475 = vunpack.c.l.b16 %v85
    %v476 = vpack.c.b16 %v475, %v474
    %477 = vrot.lane.b32.xlu0 %v476, 108
    %v478 = vpop.permute.xlu0 %477
    %v480 = vsel %vm93, %v476, 0
    %v483 = vsel %vm93, %v478, 0
    %485 = vmatpush.bf16.xpose.msra.mxu0 0
    %486 = vmatpush.bf16.xpose.msra.mxu0 0
    %487 = vmatpush.bf16.xpose.msra.mxu0 0
    %488 = vmatpush.bf16.xpose.msra.mxu0 0
    %489 = vmatpush.bf16.xpose.msra.mxu0 0
    %490 = vmatpush.bf16.xpose.msra.mxu0 0
    %491 = vmatpush.bf16.xpose.msra.mxu0 0
    %492 = vmatpush.bf16.xpose.msra.mxu0 %v483
    %493 = vmatmul.bf16.gmra.mxu0 %v480
    %v494 = vpop.f32.mrf.mxu0
    %v495 = vadd.f32 0.0, %v494
    %v496 = vpop.f32.mrf.mxu0
    %v497 = vadd.f32 0.0, %v496
    %498 = vdwg.mxu0
    %v499 = vsel %vm114, %v495, -inf
    %500 = vmax.xlane.f32.xlu0 %v499
    %v501 = vpop.xlane.xlu0 %500
    %v502 = vsel %vm114, %v497, -inf
    %503 = vmax.xlane.f32.xlu0 %v502
    %v504 = vpop.xlane.xlu0 %503
    %v505 = vsub.f32 %v495, %v501
    %v506 = vsub.f32 %v497, %v504
    %v507 = vmul.f32 %v505, 1.442695
    %v508 = vpow.pop %v507
    %v509 = vmul.f32 %v506, 1.442695
    %v510 = vpow.pop %v509
    %v511 = vsel %vm114, %v508, 0.0
    %512 = vadd.xlane.f32.xlu0 %v511
    %v513 = vpop.xlane.xlu0 %512
    %v514 = vsel %vm114, %v510, 0.0
    %515 = vadd.xlane.f32.xlu0 %v514
    %v516 = vpop.xlane.xlu0 %515
    %v517 = vrcp.pop %v513
    %v518 = vrcp.pop %v516
    %v519 = vmul.f32 %v508, %v517
    %v520 = vmul.f32 %v510, %v518
    %v521 = vpack.c.bf16 %v520, %v519
    %522 = vrot.lane.b32.xlu0 %v476, 88
    %v523 = vpop.permute.xlu0 %522
    %v526 = vsel %vm114, %v521, 0
    %528 = vmatpush.bf16.msra.mxu0 0
    %529 = vmatpush.bf16.msra.mxu0 0
    %530 = vmatpush.bf16.msra.mxu0 0
    %531 = vmatpush.bf16.msra.mxu0 0
    %532 = vmatpush.bf16.msra.mxu0 0
    %533 = vmatpush.bf16.msra.mxu0 0
    %534 = vmatpush.bf16.msra.mxu0 0
    %535 = vmatpush.bf16.msra.mxu0 %v523
    %536 = vmatmul.bf16.gmra.mxu0 %v526
    %v537 = vpop.f32.mrf.mxu0
    %v538 = vadd.f32 0.0, %v537
    %v539 = vpop.f32.mrf.mxu0
    %v540 = vadd.f32 0.0, %v539
    %541 = vdwg.mxu0
    %542 = vst.msk [vmem:[#allocation2 + $0x10] sm:$0xff] %vm93, %v538
    %543 = vst.msk [vmem:[#allocation2 + $0x18] sm:$0xff] %vm93, %v540
    %544 = vrot.lane.b32.xlu0 %v476, 124
    %v545 = vpop.permute.xlu0 %544
    %546 = vrot.lane.b32.xlu0 %v476, 104
    %v547 = vpop.permute.xlu0 %546
    %v549 = vsel %vm93, %v545, 0
    %v552 = vsel %vm93, %v547, 0
    %554 = vmatpush.bf16.xpose.msra.mxu0 0
    %555 = vmatpush.bf16.xpose.msra.mxu0 0
    %556 = vmatpush.bf16.xpose.msra.mxu0 0
    %557 = vmatpush.bf16.xpose.msra.mxu0 0
    %558 = vmatpush.bf16.xpose.msra.mxu0 0
    %559 = vmatpush.bf16.xpose.msra.mxu0 0
    %560 = vmatpush.bf16.xpose.msra.mxu0 0
    %561 = vmatpush.bf16.xpose.msra.mxu0 %v552
    %562 = vmatmul.bf16.gmra.mxu0 %v549
    %v563 = vpop.f32.mrf.mxu0
    %v564 = vadd.f32 0.0, %v563
    %v565 = vpop.f32.mrf.mxu0
    %v566 = vadd.f32 0.0, %v565
    %567 = vdwg.mxu0
    %v568 = vsel %vm114, %v564, -inf
    %569 = vmax.xlane.f32.xlu0 %v568
    %v570 = vpop.xlane.xlu0 %569
    %v571 = vsel %vm114, %v566, -inf
    %572 = vmax.xlane.f32.xlu0 %v571
    %v573 = vpop.xlane.xlu0 %572
    %v574 = vsub.f32 %v564, %v570
    %v575 = vsub.f32 %v566, %v573
    %v576 = vmul.f32 %v574, 1.442695
    %v577 = vpow.pop %v576
    %v578 = vmul.f32 %v575, 1.442695
    %v579 = vpow.pop %v578
    %v580 = vsel %vm114, %v577, 0.0
    %581 = vadd.xlane.f32.xlu0 %v580
    %v582 = vpop.xlane.xlu0 %581
    %v583 = vsel %vm114, %v579, 0.0
    %584 = vadd.xlane.f32.xlu0 %v583
    %v585 = vpop.xlane.xlu0 %584
    %v586 = vrcp.pop %v582
    %v587 = vrcp.pop %v585
    %v588 = vmul.f32 %v577, %v586
    %v589 = vmul.f32 %v579, %v587
    %v590 = vpack.c.bf16 %v589, %v588
    %591 = vrot.lane.b32.xlu0 %v476, 84
    %v592 = vpop.permute.xlu0 %591
    %v595 = vsel %vm114, %v590, 0
    %597 = vmatpush.bf16.msra.mxu0 0
    %598 = vmatpush.bf16.msra.mxu0 0
    %599 = vmatpush.bf16.msra.mxu0 0
    %600 = vmatpush.bf16.msra.mxu0 0
    %601 = vmatpush.bf16.msra.mxu0 0
    %602 = vmatpush.bf16.msra.mxu0 0
    %603 = vmatpush.bf16.msra.mxu0 0
    %604 = vmatpush.bf16.msra.mxu0 %v592
    %605 = vmatmul.bf16.gmra.mxu0 %v595
    %v606 = vpop.f32.mrf.mxu0
    %v607 = vadd.f32 0.0, %v606
    %v608 = vpop.f32.mrf.mxu0
    %v609 = vadd.f32 0.0, %v608
    %610 = vdwg.mxu0
    %613 = vrot.lane.b32.xlu0 %v607, 4
    %v614 = vpop.permute.xlu0 %613
    %615 = vrot.lane.b32.xlu0 %v609, 4
    %v616 = vpop.permute.xlu0 %615
    %619 = vst.msk [vmem:[#allocation2 + $0x10] sm:$0xff] %vm235, %v614
    %620 = vst.msk [vmem:[#allocation2 + $0x18] sm:$0xff] %vm235, %v616
    %621 = vrot.lane.b32.xlu0 %v476, 120
    %v622 = vpop.permute.xlu0 %621
    %623 = vrot.lane.b32.xlu0 %v476, 100
    %v624 = vpop.permute.xlu0 %623
    %v626 = vsel %vm93, %v622, 0
    %v629 = vsel %vm93, %v624, 0
    %631 = vmatpush.bf16.xpose.msra.mxu0 0
    %632 = vmatpush.bf16.xpose.msra.mxu0 0
    %633 = vmatpush.bf16.xpose.msra.mxu0 0
    %634 = vmatpush.bf16.xpose.msra.mxu0 0
    %635 = vmatpush.bf16.xpose.msra.mxu0 0
    %636 = vmatpush.bf16.xpose.msra.mxu0 0
    %637 = vmatpush.bf16.xpose.msra.mxu0 0
    %638 = vmatpush.bf16.xpose.msra.mxu0 %v629
    %639 = vmatmul.bf16.gmra.mxu0 %v626
    %v640 = vpop.f32.mrf.mxu0
    %v641 = vadd.f32 0.0, %v640
    %v642 = vpop.f32.mrf.mxu0
    %v643 = vadd.f32 0.0, %v642
    %644 = vdwg.mxu0
    %v645 = vsel %vm114, %v641, -inf
    %646 = vmax.xlane.f32.xlu0 %v645
    %v647 = vpop.xlane.xlu0 %646
    %v648 = vsel %vm114, %v643, -inf
    %649 = vmax.xlane.f32.xlu0 %v648
    %v650 = vpop.xlane.xlu0 %649
    %v651 = vsub.f32 %v641, %v647
    %v652 = vsub.f32 %v643, %v650
    %v653 = vmul.f32 %v651, 1.442695
    %v654 = vpow.pop %v653
    %v655 = vmul.f32 %v652, 1.442695
    %v656 = vpow.pop %v655
    %v657 = vsel %vm114, %v654, 0.0
    %658 = vadd.xlane.f32.xlu0 %v657
    %v659 = vpop.xlane.xlu0 %658
    %v660 = vsel %vm114, %v656, 0.0
    %661 = vadd.xlane.f32.xlu0 %v660
    %v662 = vpop.xlane.xlu0 %661
    %v663 = vrcp.pop %v659
    %v664 = vrcp.pop %v662
    %v665 = vmul.f32 %v654, %v663
    %v666 = vmul.f32 %v656, %v664
    %v667 = vpack.c.bf16 %v666, %v665
    %668 = vrot.lane.b32.xlu0 %v476, 80
    %v669 = vpop.permute.xlu0 %668
    %v672 = vsel %vm114, %v667, 0
    %674 = vmatpush.bf16.msra.mxu0 0
    %675 = vmatpush.bf16.msra.mxu0 0
    %676 = vmatpush.bf16.msra.mxu0 0
    %677 = vmatpush.bf16.msra.mxu0 0
    %678 = vmatpush.bf16.msra.mxu0 0
    %679 = vmatpush.bf16.msra.mxu0 0
    %680 = vmatpush.bf16.msra.mxu0 0
    %681 = vmatpush.bf16.msra.mxu0 %v669
    %682 = vmatmul.bf16.gmra.mxu0 %v672
    %v683 = vpop.f32.mrf.mxu0
    %v684 = vadd.f32 0.0, %v683
    %v685 = vpop.f32.mrf.mxu0
    %v686 = vadd.f32 0.0, %v685
    %687 = vdwg.mxu0
    %690 = vrot.lane.b32.xlu0 %v684, 8
    %v691 = vpop.permute.xlu0 %690
    %692 = vrot.lane.b32.xlu0 %v686, 8
    %v693 = vpop.permute.xlu0 %692
    %696 = vst.msk [vmem:[#allocation2 + $0x10] sm:$0xff] %vm313, %v691
    %697 = vst.msk [vmem:[#allocation2 + $0x18] sm:$0xff] %vm313, %v693
    %698 = vrot.lane.b32.xlu0 %v476, 116
    %v699 = vpop.permute.xlu0 %698
    %700 = vrot.lane.b32.xlu0 %v476, 96
    %v701 = vpop.permute.xlu0 %700
    %v703 = vsel %vm93, %v699, 0
    %v706 = vsel %vm93, %v701, 0
    %708 = vmatpush.bf16.xpose.msra.mxu0 0
    %709 = vmatpush.bf16.xpose.msra.mxu0 0
    %710 = vmatpush.bf16.xpose.msra.mxu0 0
    %711 = vmatpush.bf16.xpose.msra.mxu0 0
    %712 = vmatpush.bf16.xpose.msra.mxu0 0
    %713 = vmatpush.bf16.xpose.msra.mxu0 0
    %714 = vmatpush.bf16.xpose.msra.mxu0 0
    %715 = vmatpush.bf16.xpose.msra.mxu0 %v706
    %716 = vmatmul.bf16.gmra.mxu0 %v703
    %v717 = vpop.f32.mrf.mxu0
    %v718 = vadd.f32 0.0, %v717
    %v719 = vpop.f32.mrf.mxu0
    %v720 = vadd.f32 0.0, %v719
    %721 = vdwg.mxu0
    %v722 = vsel %vm114, %v718, -inf
    %723 = vmax.xlane.f32.xlu0 %v722
    %v724 = vpop.xlane.xlu0 %723
    %v725 = vsel %vm114, %v720, -inf
    %726 = vmax.xlane.f32.xlu0 %v725
    %v727 = vpop.xlane.xlu0 %726
    %v728 = vsub.f32 %v718, %v724
    %v729 = vsub.f32 %v720, %v727
    %v730 = vmul.f32 %v728, 1.442695
    %v731 = vpow.pop %v730
    %v732 = vmul.f32 %v729, 1.442695
    %v733 = vpow.pop %v732
    %v734 = vsel %vm114, %v731, 0.0
    %735 = vadd.xlane.f32.xlu0 %v734
    %v736 = vpop.xlane.xlu0 %735
    %v737 = vsel %vm114, %v733, 0.0
    %738 = vadd.xlane.f32.xlu0 %v737
    %v739 = vpop.xlane.xlu0 %738
    %v740 = vrcp.pop %v736
    %v741 = vrcp.pop %v739
    %v742 = vmul.f32 %v731, %v740
    %v743 = vmul.f32 %v733, %v741
    %v744 = vpack.c.bf16 %v743, %v742
    %745 = vrot.lane.b32.xlu0 %v476, 76
    %v746 = vpop.permute.xlu0 %745
    %v749 = vsel %vm114, %v744, 0
    %751 = vmatpush.bf16.msra.mxu0 0
    %752 = vmatpush.bf16.msra.mxu0 0
    %753 = vmatpush.bf16.msra.mxu0 0
    %754 = vmatpush.bf16.msra.mxu0 0
    %755 = vmatpush.bf16.msra.mxu0 0
    %756 = vmatpush.bf16.msra.mxu0 0
    %757 = vmatpush.bf16.msra.mxu0 0
    %758 = vmatpush.bf16.msra.mxu0 %v746
    %759 = vmatmul.bf16.gmra.mxu0 %v749
    %v760 = vpop.f32.mrf.mxu0
    %v761 = vadd.f32 0.0, %v760
    %v762 = vpop.f32.mrf.mxu0
    %v763 = vadd.f32 0.0, %v762
    %764 = vdwg.mxu0
    %767 = vrot.lane.b32.xlu0 %v761, 12
    %v768 = vpop.permute.xlu0 %767
    %769 = vrot.lane.b32.xlu0 %v763, 12
    %v770 = vpop.permute.xlu0 %769
    %773 = vst.msk [vmem:[#allocation2 + $0x10] sm:$0xff] %vm391, %v768
    %774 = vst.msk [vmem:[#allocation2 + $0x18] sm:$0xff] %vm391, %v770
    %775 = vrot.lane.b32.xlu0 %v476, 112
    %v776 = vpop.permute.xlu0 %775
    %777 = vrot.lane.b32.xlu0 %v476, 92
    %v778 = vpop.permute.xlu0 %777
    %v780 = vsel %vm93, %v776, 0
    %v783 = vsel %vm93, %v778, 0
    %785 = vmatpush.bf16.xpose.msra.mxu0 0
    %786 = vmatpush.bf16.xpose.msra.mxu0 0
    %787 = vmatpush.bf16.xpose.msra.mxu0 0
    %788 = vmatpush.bf16.xpose.msra.mxu0 0
    %789 = vmatpush.bf16.xpose.msra.mxu0 0
    %790 = vmatpush.bf16.xpose.msra.mxu0 0
    %791 = vmatpush.bf16.xpose.msra.mxu0 0
    %792 = vmatpush.bf16.xpose.msra.mxu0 %v783
    %793 = vmatmul.bf16.gmra.mxu0 %v780
    %v794 = vpop.f32.mrf.mxu0
    %v795 = vadd.f32 0.0, %v794
    %v796 = vpop.f32.mrf.mxu0
    %v797 = vadd.f32 0.0, %v796
    %798 = vdwg.mxu0
    %v799 = vsel %vm114, %v795, -inf
    %800 = vmax.xlane.f32.xlu0 %v799
    %v801 = vpop.xlane.xlu0 %800
    %v802 = vsel %vm114, %v797, -inf
    %803 = vmax.xlane.f32.xlu0 %v802
    %v804 = vpop.xlane.xlu0 %803
    %v805 = vsub.f32 %v795, %v801
    %v806 = vsub.f32 %v797, %v804
    %v807 = vmul.f32 %v805, 1.442695
    %v808 = vpow.pop %v807
    %v809 = vmul.f32 %v806, 1.442695
    %v810 = vpow.pop %v809
    %v811 = vsel %vm114, %v808, 0.0
    %812 = vadd.xlane.f32.xlu0 %v811
    %v813 = vpop.xlane.xlu0 %812
    %v814 = vsel %vm114, %v810, 0.0
    %815 = vadd.xlane.f32.xlu0 %v814
    %v816 = vpop.xlane.xlu0 %815
    %v817 = vrcp.pop %v813
    %v818 = vrcp.pop %v816
    %v819 = vmul.f32 %v808, %v817
    %v820 = vmul.f32 %v810, %v818
    %v821 = vpack.c.bf16 %v820, %v819
    %822 = vrot.lane.b32.xlu0 %v476, 72
    %v823 = vpop.permute.xlu0 %822
    %v826 = vsel %vm114, %v821, 0
    %828 = vmatpush.bf16.msra.mxu0 0
    %829 = vmatpush.bf16.msra.mxu0 0
    %830 = vmatpush.bf16.msra.mxu0 0
    %831 = vmatpush.bf16.msra.mxu0 0
    %832 = vmatpush.bf16.msra.mxu0 0
    %833 = vmatpush.bf16.msra.mxu0 0
    %834 = vmatpush.bf16.msra.mxu0 0
    %835 = vmatpush.bf16.msra.mxu0 %v823
    %836 = vmatmul.bf16.gmra.mxu0 %v826
    %v837 = vpop.f32.mrf.mxu0
    %v838 = vadd.f32 0.0, %v837
    %v839 = vpop.f32.mrf.mxu0
    %v840 = vadd.f32 0.0, %v839
    %841 = vdwg.mxu0
    %844 = vrot.lane.b32.xlu0 %v838, 16
    %v845 = vpop.permute.xlu0 %844
    %846 = vrot.lane.b32.xlu0 %v840, 16
    %v847 = vpop.permute.xlu0 %846
    %850 = vst.msk [vmem:[#allocation2 + $0x10] sm:$0xff] %vm469, %v845
    %851 = vst.msk [vmem:[#allocation2 + $0x18] sm:$0xff] %vm469, %v847
    %v852 = vld [vmem:[#allocation2] sm:$0xff]
    %v853 = vld [vmem:[#allocation2 + $0x8] sm:$0xff]
    %v854 = vld [vmem:[#allocation2 + $0x10] sm:$0xff]
    %v855 = vld [vmem:[#allocation2 + $0x18] sm:$0xff]
    %v856 = vpack.c.bf16 %v853, %v852
    %v857 = vpack.c.bf16 %v855, %v854
    %v858 = vld [vmem:[%s3] sm:$0xf]
    %v859 = vld [vmem:[%s3 + $0x4] sm:$0xf]
    %v860 = vld [vmem:[%s3 + $0x8] sm:$0x3]
    %v861 = vld [vmem:[%s4] sm:$0x1]
    %v863 = vperm.slane %v861, 0
    %v868 = vunpack.c.l.b16 %v858
    %v869 = vunpack.c.l.b16 %v859
    %v870 = vunpack.c.l.b16 %v860
    %v871 = vpack.c.b16 %v869, %v868
    %v872 = vpack.c.b16 %v870, %v870
    %v875 = vsel %vm52, %v856, 0
    %v878 = vsel %vm52, %v857, 0
    %v881 = vsel %vm59, %v872, 0
    %883 = vmatpush.bf16.msra.mxu0 0
    %884 = vmatpush.bf16.msra.mxu0 0
    %885 = vmatpush.bf16.msra.mxu0 0
    %886 = vmatpush.bf16.msra.mxu0 0
    %887 = vmatpush.bf16.msra.mxu0 0
    %888 = vmatpush.bf16.msra.mxu0 0
    %889 = vmatpush.bf16.msra.mxu0 %v881
    %890 = vmatpush.bf16.msra.mxu0 %v871
    %891 = vmatmul.bf16.gmra.mxu0 %v875
    %v892 = vpop.f32.mrf.mxu0
    %v893 = vadd.f32 %v863, %v892
    %v894 = vpop.f32.mrf.mxu0
    %v895 = vadd.f32 %v863, %v894
    %896 = vmatmul.bf16.gmra.mxu0 %v878
    %v897 = vpop.f32.mrf.mxu0
    %v898 = vadd.f32 %v863, %v897
    %v899 = vpop.f32.mrf.mxu0
    %v900 = vadd.f32 %v863, %v899
    %901 = vdwg.mxu0
    %902 = vst.msk [vmem:[#allocation3] sm:$0xff] %vm52, %v893
    %903 = vst.msk [vmem:[#allocation3 + $0x8] sm:$0xff] %vm52, %v895
    %904 = vst.msk [vmem:[#allocation3 + $0x10] sm:$0xff] %vm52, %v898
    %905 = vst.msk [vmem:[#allocation3 + $0x18] sm:$0xff] %vm52, %v900
    // Predicated region
    $region22: #{multi_head_attention.1} parent=1 // pred_check
      _
    $region23: #{multi_head_attention.1} parent=1 // pred_check_branch
      %907 = sbr.rel (0) target = $region25
    $region24: #{multi_head_attention.1} parent=1 // pred_region
      %909 = vsyncadd [#allocation4], 0
      %s910 = sshll.u32 [#allocation3], 4
      %s911 = int_to_ptr.vmem [resolvable:$true] %s910
      %s912 = sshll.u32 %s5, 4
      %s913 = int_to_ptr.hbm [resolvable:$true] %s912
      %918 = dma.vmem_to_hbm [thread:$0]  %s911, 512, %s913, [#allocation4], 128, 128, 8
    $region25: #{multi_head_attention.1} parent=1 // pred_fallthru
      _
    // Predicated region
    $region26: #{multi_head_attention.1} parent=1 // pred_check
      _
    $region27: #{multi_head_attention.1} parent=1 // pred_check_branch
      %920 = sbr.rel (0) target = $region29
    $region28: #{multi_head_attention.1} parent=1 // pred_region
      %922 = dma.done [#allocation4], 512
    $region29: #{multi_head_attention.1} parent=1 // pred_fallthru
      _
    %923 = vsyncpa [#allocation4], 1

</llo_original>
